<compile_context>
chip_gen: v6e
topology: v6e:2x2x1
jax: 0.10.0
libtpu: 0.0.40
codegen_flags: <defaults>
</compile_context>

<pallas_src>
import math

import jax
import jax.numpy as jnp
from jax.experimental import pallas as pl
from jax.experimental.pallas import tpu as pltpu

_SQRT_2_OVER_PI = math.sqrt(2.0 / math.pi)
# 0.5*x*(1 + tanh(c*(x + a*x^3)))  ==  x * sigmoid(2*c*(x + a*x^3))
#                                  ==  x * sigmoid(x*(2c + (2c*a)*x^2))
_C1 = 2.0 * _SQRT_2_OVER_PI
_C2 = 2.0 * _SQRT_2_OVER_PI * 0.044715


def _gelu_kernel(x_ref, o_ref):
    # f32 compute, cast back at the end (f64 would silently lose precision;
    # this module is intended for f32/bf16 activations).
    x = x_ref[...].astype(jnp.float32)
    u = x * (_C1 + _C2 * (x * x))            # == 2*c*(x + 0.044715*x^3)
    o_ref[...] = (x * jax.nn.sigmoid(u)).astype(o_ref.dtype)


def _default_tile_bytes() -> int:
    """Generation-aware target tile size."""
    try:
        vmem = getattr(pltpu.get_tpu_info(), "vmem_capacity_bytes", None)
    except Exception:
        vmem = None
    if vmem is None:
        return 4 * 1024 * 1024               # safe middle ground
    if vmem <= 64 * 1024 * 1024:              # v7x: 64 MiB VMEM per TensorCore
        return 2 * 1024 * 1024
    return 8 * 1024 * 1024                    # v5e / v6e: 128 MiB VMEM


def gelu_pallas(x: jax.Array, *, target_tile_bytes=None) -> jax.Array:
    """Tanh-approximation GELU (same formula as the reference nn.Module)."""
    orig_shape = x.shape
    orig_dtype = x.dtype
    n = x.size
    if n == 0:
        return x
    if target_tile_bytes is None:
        target_tile_bytes = _default_tile_bytes()

    # --- lane-dense 2D slab: widest LANES that divides the element count ----
    pad = 0
    for lanes in (1024, 512, 256, 128):
        if n % lanes == 0:
            LANES = lanes
            break
    else:
        LANES = 128
        pad = pl.cdiv(n, LANES) * LANES - n

    x_flat = jnp.ravel(x)
    if pad:
        # Rare path (n not a multiple of 128). GELU(0) == 0, zero-pad is safe.
        x_flat = jnp.pad(x_flat, (0, pad))
    rows = (n + pad) // LANES
    x2d = x_flat.reshape(rows, LANES)

    # --- choose tile rows ----------------------------------------------------
    itemsize = jnp.dtype(orig_dtype).itemsize
    sub = max(8, 32 // max(1, itemsize))      # sublane pack: 8 f32 / 16 bf16 / 32 i8
    row_bytes = LANES * itemsize
    tile_rows = max(sub, (target_tile_bytes // row_bytes // sub) * sub)

    if rows >= 4 * sub:
        # Keep at least ~4 grid steps so load/compute/store pipeline and the
        # grid can be shared by v7x's two TensorCores.
        cap = max(sub, ((rows // 4) // sub) * sub)
        tile_rows = min(tile_rows, cap)
        # Ragged last block (rows % tile_rows != 0) is masked by Pallas — no
        # extra pad pass and no output slice needed.
        grid = (pl.cdiv(rows, tile_rows),)
    else:
        # Tiny slab: single full-extent block (exempt from (8,128) rule).
        tile_rows = rows
        grid = (1,)

    # --- scoped VMEM sized to the tile ----------------------------------------
    tile_bytes = tile_rows * LANES * itemsize
    f32_tile_bytes = tile_rows * LANES * 4
    # double-buffered in + out tiles, f32 compute temporaries, small slack
    vmem_limit = 4 * tile_bytes + 2 * f32_tile_bytes + 4 * 1024 * 1024
    vmem_limit = max(16 * 1024 * 1024, min(vmem_limit, 64 * 1024 * 1024))

    out = pl.pallas_call(
        _gelu_kernel,
        out_shape=jax.ShapeDtypeStruct((rows, LANES), orig_dtype),
        grid_spec=pltpu.PrefetchScalarGridSpec(
            num_scalar_prefetch=0,
            grid=grid,
            in_specs=[pl.BlockSpec((tile_rows, LANES), lambda i: (i, 0))],
            out_specs=pl.BlockSpec((tile_rows, LANES), lambda i: (i, 0)),
        ),
        compiler_params=pltpu.CompilerParams(
            # Independent grid steps: lets v7x shard them across its 2
            # TensorCores; harmless no-op on single-TC v5e/v6e.
            dimension_semantics=("parallel",),
            vmem_limit_bytes=int(vmem_limit),
        ),
    )(x2d)

    out_flat = out.reshape(-1)
    if pad:
        out_flat = out_flat[:n]
    return out_flat.reshape(orig_shape)


def gelu_reference(x: jax.Array) -> jax.Array:
    c = jnp.sqrt(jnp.asarray(2.0 / math.pi, dtype=jnp.float32)).astype(x.dtype)
    return 0.5 * x * (1.0 + jnp.tanh(c * (x + 0.044715 * x**3)))


if __name__ == "__main__":
    key = jax.random.PRNGKey(0)
    # Small NCHW-style activation, consistent with a generic activation module.
    x = jax.random.normal(key, (2, 4, 16, 16), dtype=jnp.float32)

    y = gelu_pallas(x)
    jax.block_until_ready(y)

    y_ref = gelu_reference(x)
    assert y.shape == x.shape and y.dtype == x.dtype
    assert jnp.allclose(y, y_ref, atol=1e-5, rtol=1e-5)

    print("KERNEL_OK")
</pallas_src>

<mosaic_0001>
module attributes {stable_mosaic.version = 11 : i64} {
  func.func @_gelu_kernel(%arg0: i32, %arg1: memref<2x1024xf32, #tpu.memory_space<vmem>>, %arg2: memref<2x1024xf32, #tpu.memory_space<vmem>>) attributes {dimension_semantics = [#tpu.dimension_semantics<parallel>], iteration_bounds = array<i64: 1>, scalar_prefetch = 0 : i64, scratch_operands = 0 : i64, tpu.core_type = #tpu.core_type<tc>, window_params = [{transform_indices = @transform_0, window_bounds = array<i64: 2, 1024>}, {transform_indices = @transform_1, window_bounds = array<i64: 2, 1024>}]} {
    %c0 = arith.constant 0 : index
    %c0_0 = arith.constant 0 : index
    %0 = vector.load %arg1[%c0, %c0_0] : memref<2x1024xf32, #tpu.memory_space<vmem>>, vector<2x1024xf32>
    %1 = arith.mulf %0, %0 : vector<2x1024xf32>
    %cst = arith.constant 0.0713548139 : f32
    %2 = vector.broadcast %cst : f32 to vector<2x1024xf32>
    %3 = arith.mulf %2, %1 : vector<2x1024xf32>
    %cst_1 = arith.constant 1.59576917 : f32
    %4 = vector.broadcast %cst_1 : f32 to vector<2x1024xf32>
    %5 = arith.addf %4, %3 : vector<2x1024xf32>
    %6 = arith.mulf %0, %5 : vector<2x1024xf32>
    %7 = arith.negf %6 : vector<2x1024xf32>
    %8 = math.exp %7 : vector<2x1024xf32>
    %cst_2 = arith.constant 1.000000e+00 : f32
    %9 = vector.broadcast %cst_2 : f32 to vector<2x1024xf32>
    %10 = arith.addf %9, %8 : vector<2x1024xf32>
    %11 = arith.divf %9, %10 : vector<2x1024xf32>
    %12 = arith.mulf %0, %11 : vector<2x1024xf32>
    %c0_3 = arith.constant 0 : index
    %c0_4 = arith.constant 0 : index
    %13 = vector.load %arg2[%c0_3, %c0_4] : memref<2x1024xf32, #tpu.memory_space<vmem>>, vector<2x1024xf32>
    tpu.vector_store %arg2[%c0_3, %c0_4], %12 {strides = array<i32>} : memref<2x1024xf32, #tpu.memory_space<vmem>>, vector<2x1024xf32>,
    return
  }
  func.func @transform_0(%arg0: i32) -> (i32, i32) {
    %c0_i32 = arith.constant 0 : i32
    %c0_i32_0 = arith.constant 0 : i32
    return %arg0, %c0_i32 : i32, i32
  }
  func.func @transform_1(%arg0: i32) -> (i32, i32) {
    %c0_i32 = arith.constant 0 : i32
    %c0_i32_0 = arith.constant 0 : i32
    return %arg0, %c0_i32 : i32, i32
  }
}

</mosaic_0001>

<llo_original>
// kernel: tpu_custom_call.1
$region0: #{tpu_custom_call.1}
  #allocation0 [shape = 'u32[]', space=smem, size = 0x4, offset = 0x4, fixed_abs, tag = 'smem constant byte address 0x4 - core index']
  #allocation1 [shape = 'u32[144,128]{1,0:T(1,128)}', space=vmem, size = 0x12000, scoped, tag = 'internal scratch']
  %s0 = inlined_call_operand.hbm [shape: f32[2,1024], index: 0, kind: input, shape index: {}]
  %s1 = inlined_call_operand.hbm [shape: f32[2,1024], index: 1, kind: output, shape index: {}]
  %s2 = sld [smem:[#allocation0]]
  $region18: #{tpu_custom_call.1} parent=0
    _
  %s4 = ssub.s32 1, %s2
  %s5 = scalar_select 0, %s4, %s2
  $region1: #{tpu_custom_call.1} parent=0
    #allocation2 [shape = 'u8[8192]{0}', space=vmem, size = 0x2000, scoped, tag = 'input window, operand 0, single buffered']
    #allocation3 [shape = 's32[1]{0}', space=sflag, size = 0x4, scoped, tag = 'scoped memory for tpu_custom_call.1']
    #allocation4 [shape = 's32[1]{0}', space=sflag, size = 0x4, scoped, tag = 'scoped memory for tpu_custom_call.1']
    #allocation5 [shape = 'u8[8192]{0}', space=vmem, size = 0x2000, scoped, tag = 'output window, operand 0, single buffered']
    %6 = vsyncpa [#allocation3], 0
    %7 = vsyncpa [#allocation4], 0
    // Predicated region
    $region2: #{tpu_custom_call.1} parent=1 // pred_check
      _
    $region3: #{tpu_custom_call.1} parent=1 // pred_check_branch
      %9 = sbr.rel (0) target = $region5
    $region4: #{tpu_custom_call.1} parent=1 // pred_region
      %s11 = ssub.s32 256, 256
      %12 = vsyncadd [#allocation3], %s11
      %s14 = sshll.u32 [#allocation2], 4
      %s15 = int_to_ptr.vmem [resolvable:$true] %s14
      %17 = dma.hbm_to_vmem [thread:$0]  %s0, 256, %s15, [#allocation3]
    $region5: #{tpu_custom_call.1} parent=1 // pred_fallthru
      _
    // Predicated region
    $region6: #{tpu_custom_call.1} parent=1 // pred_check
      _
    $region7: #{tpu_custom_call.1} parent=1 // pred_check_branch
      %19 = sbr.rel (0) target = $region9
    $region8: #{tpu_custom_call.1} parent=1 // pred_region
      %20 = dma.done [#allocation3], 256
    $region9: #{tpu_custom_call.1} parent=1 // pred_fallthru
      _
    %v21 = vld [vmem:[#allocation2] sm:$0xff]
    %v22 = vld [vmem:[#allocation2 + $0x8] sm:$0xff]
    %v23 = vmul.f32 %v21, %v21
    %v24 = vmul.f32 %v22, %v22
    %v25 = vmul.f32 %v23, 0.071354814
    %v26 = vmul.f32 %v24, 0.071354814
    %v27 = vadd.f32 %v25, 1.5957692
    %v28 = vadd.f32 %v26, 1.5957692
    %v29 = vmul.f32 %v21, %v27
    %v30 = vmul.f32 %v22, %v28
    %v31 = vxor.u32 %v29, 2147483648
    %v32 = vxor.u32 %v30, 2147483648
    %v33 = vmul.f32 %v31, 1.442695
    %v34 = vpow.pop %v33
    %v35 = vmul.f32 %v32, 1.442695
    %v36 = vpow.pop %v35
    %v37 = vadd.f32 %v34, 1.0
    %v38 = vadd.f32 %v36, 1.0
    %v39 = vrcp.pop %v37
    %v40 = vmul.f32 1.0, %v39
    %v41 = vrcp.pop %v38
    %v42 = vmul.f32 1.0, %v41
    %v43 = vmul.f32 %v21, %v40
    %v44 = vmul.f32 %v22, %v42
    %45 = vst [vmem:[#allocation5] sm:$0xff] %v43
    %46 = vst [vmem:[#allocation5 + $0x8] sm:$0xff] %v44
    // Predicated region
    $region10: #{tpu_custom_call.1} parent=1 // pred_check
      _
    $region11: #{tpu_custom_call.1} parent=1 // pred_check_branch
      %48 = sbr.rel (0) target = $region13
    $region12: #{tpu_custom_call.1} parent=1 // pred_region
      %s50 = ssub.s32 256, 256
      %51 = vsyncadd [#allocation4], %s50
      %s53 = sshll.u32 [#allocation5], 4
      %s54 = int_to_ptr.vmem [resolvable:$true] %s53
      %56 = dma.vmem_to_hbm [thread:$0]  %s54, 256, %s1, [#allocation4]
    $region13: #{tpu_custom_call.1} parent=1 // pred_fallthru
      _
    // Predicated region
    $region14: #{tpu_custom_call.1} parent=1 // pred_check
      _
    $region15: #{tpu_custom_call.1} parent=1 // pred_check_branch
      %58 = sbr.rel (0) target = $region17
    $region16: #{tpu_custom_call.1} parent=1 // pred_region
      %59 = dma.done [#allocation4], 256
    $region17: #{tpu_custom_call.1} parent=1 // pred_fallthru
      _
    %60 = vsyncpa [#allocation3], 1
    %61 = vsyncpa [#allocation4], 1

</llo_original>
